<compile_context>
chip_gen: v6e
topology: v6e:2x2x1
jax: 0.10.0
libtpu: 0.0.40
codegen_flags: <defaults>
</compile_context>

<pallas_src>
import math

import jax
import jax.numpy as jnp
from jax.experimental import pallas as pl
from jax.experimental.pallas import tpu as pltpu


def _gelu_exact(x):
    # PyTorch nn.GELU() default is the exact erf-based formulation.
    return 0.5 * x * (1.0 + jax.lax.erf(x * (1.0 / math.sqrt(2.0))))


def _round_up(x, m):
    return ((x + m - 1) // m) * m


def _vmem_capacity_bytes():
    try:
        return int(pltpu.get_tpu_info().vmem_capacity_bytes)
    except Exception:
        return 64 * 1024 * 1024  # conservative (v7x per-core) fallback


def _pick_tm(M, tm_max):
    """MXU-friendly row tile, >=2 row tiles when M allows (v7x megacore)."""
    for cand in (512, 256, 128):
        if tm_max >= cand and M >= 2 * cand:
            return cand
    if M >= 128 and tm_max >= 128:
        return 128
    return max(8, min(_round_up(M, 8), _round_up(tm_max, 8)))


# ---------------------------------------------------------------------------
# Kernels
# ---------------------------------------------------------------------------
def mlp_resident_kernel(x_ref, w1_ref, b1_ref, w2_ref, b2_ref, o_ref):
    # Weights are VMEM-resident (constant block index) -> fetched once.
    h = jnp.dot(x_ref[...], w1_ref[...], preferred_element_type=jnp.float32)
    h = _gelu_exact(h + b1_ref[...])
    # dropout(p=0) is identity -> no-op
    out = jnp.dot(h.astype(w2_ref.dtype), w2_ref[...],
                  preferred_element_type=jnp.float32)
    o_ref[...] = (out + b2_ref[...]).astype(o_ref.dtype)


def mlp_streamed_kernel(x_ref, w1_ref, b1_ref, w2_ref, b2_ref, o_ref, acc_ref):
    h_idx = pl.program_id(1)

    @pl.when(h_idx == 0)
    def _init():
        acc_ref[...] = jnp.zeros_like(acc_ref)

    # fc1 slice: (tm, C_in) @ (C_in, th) + (1, th), then GELU (elementwise,
    # safe per hidden slice).
    h = jnp.dot(x_ref[...], w1_ref[...], preferred_element_type=jnp.float32)
    h = _gelu_exact(h + b1_ref[...])
    # fc2 partial sum: (tm, th) @ (th, C_out_pad) accumulated in f32.
    acc_ref[...] += jnp.dot(h.astype(w2_ref.dtype), w2_ref[...],
                            preferred_element_type=jnp.float32)

    @pl.when(h_idx == pl.num_programs(1) - 1)
    def _finalize():
        o_ref[...] = (acc_ref[...] + b2_ref[...]).astype(o_ref.dtype)


# ---------------------------------------------------------------------------
# Wrapper
# ---------------------------------------------------------------------------
def mlp_pallas(x, w1, b1, w2, b2, *, tm_max=512, th_max=512,
               matmul_dtype=None, force_path=None):
    """x: (B, N, C_in); w1: (C_in, H); b1: (H,); w2: (H, C_out); b2: (C_out,).

    matmul_dtype: optional dtype (e.g. jnp.bfloat16) for MXU operands; f32
      accumulation is kept either way (precision/perf tradeoff, off by default).
    force_path: None (auto), "resident", or "streamed".
    """
    B, N, C_in = x.shape
    H = w1.shape[1]
    C_out = w2.shape[1]
    M = B * N
    out_dtype = x.dtype

    if matmul_dtype is not None:
        x = x.astype(matmul_dtype)
        w1 = w1.astype(matmul_dtype)
        b1 = b1.astype(matmul_dtype)
        w2 = w2.astype(matmul_dtype)
        b2 = b2.astype(matmul_dtype)

    w_itemsize = jnp.dtype(w1.dtype).itemsize
    x_itemsize = jnp.dtype(x.dtype).itemsize
    o_itemsize = jnp.dtype(out_dtype).itemsize

    tm = _pick_tm(M, tm_max)
    M_pad = _round_up(M, tm)
    H_pad = _round_up(H, 128)
    C_out_pad = _round_up(C_out, 128)   # lane-dense output -> unmasked stores
    num_row_tiles = M_pad // tm

    # --- choose schedule: weights resident in VMEM vs streamed over H ------
    vmem_cap = _vmem_capacity_bytes()
    weight_bytes = (C_in * H_pad + H_pad * C_out_pad + H_pad + C_out_pad) * w_itemsize
    resident_need = (
        2 * weight_bytes                              # conservative: 2 buffers
        + 2 * tm * C_in * x_itemsize                  # double-buffered x tile
        + 2 * tm * C_out_pad * o_itemsize             # double-buffered out tile
        + tm * H_pad * 4 + tm * C_out_pad * 4         # f32 intermediates
        + (4 << 20))                                  # slack
    if force_path == "resident":
        use_resident = True
    elif force_path == "streamed":
        use_resident = False
    else:
        use_resident = resident_need <= int(0.75 * vmem_cap)

    # --- pad operands (exact: GELU(0)=0, zero W2 rows) ----------------------
    x2d = x.reshape(M, C_in)
    if M_pad != M:
        x2d = jnp.pad(x2d, ((0, M_pad - M), (0, 0)))
    w1p = jnp.pad(w1, ((0, 0), (0, H_pad - H))) if H_pad != H else w1
    b1p = jnp.pad(b1, ((0, H_pad - H),)) if H_pad != H else b1
    if H_pad != H or C_out_pad != C_out:
        w2p = jnp.pad(w2, ((0, H_pad - H), (0, C_out_pad - C_out)))
    else:
        w2p = w2
    b2p = jnp.pad(b2, ((0, C_out_pad - C_out),)) if C_out_pad != C_out else b2
    b1_2d = b1p.reshape(1, H_pad)
    b2_2d = b2p.reshape(1, C_out_pad)

    flops = 2 * M_pad * H_pad * (C_in + C_out_pad)

    if use_resident:
        grid = (num_row_tiles,)
        cost = pl.CostEstimate(
            flops=flops,
            transcendentals=0,  # erf lowers to a VPU polynomial, not EUP
            bytes_accessed=(x2d.size * x_itemsize
                            + (w1p.size + b1_2d.size + w2p.size + b2_2d.size) * w_itemsize
                            + M_pad * C_out_pad * o_itemsize),
        )
        out2d = pl.pallas_call(
            mlp_resident_kernel,
            out_shape=jax.ShapeDtypeStruct((M_pad, C_out_pad), out_dtype),
            grid_spec=pltpu.PrefetchScalarGridSpec(
                num_scalar_prefetch=0,
                grid=grid,
                in_specs=[
                    pl.BlockSpec((tm, C_in), lambda i: (i, 0)),            # x rows
                    pl.BlockSpec((C_in, H_pad), lambda i: (0, 0)),         # W1 (resident)
                    pl.BlockSpec((1, H_pad), lambda i: (0, 0)),            # b1
                    pl.BlockSpec((H_pad, C_out_pad), lambda i: (0, 0)),    # W2 (resident)
                    pl.BlockSpec((1, C_out_pad), lambda i: (0, 0)),        # b2
                ],
                out_specs=pl.BlockSpec((tm, C_out_pad), lambda i: (i, 0)),
            ),
            compiler_params=pltpu.CompilerParams(
                dimension_semantics=("parallel",),
                vmem_limit_bytes=int(0.8 * vmem_cap)),
            cost_estimate=cost,
        )(x2d, w1p, b1_2d, w2p, b2_2d)
    else:
        th = min(th_max, H_pad)
        th = _round_up(th, 128)
        H_grid_pad = _round_up(H_pad, th)
        if H_grid_pad != H_pad:
            w1p = jnp.pad(w1p, ((0, 0), (0, H_grid_pad - H_pad)))
            b1_2d = jnp.pad(b1_2d, ((0, 0), (0, H_grid_pad - H_pad)))
            w2p = jnp.pad(w2p, ((0, H_grid_pad - H_pad), (0, 0)))
            H_pad = H_grid_pad
        grid = (num_row_tiles, H_pad // th)
        cost = pl.CostEstimate(
            flops=flops,
            transcendentals=0,
            bytes_accessed=(x2d.size * x_itemsize
                            + num_row_tiles * (w1p.size + b1_2d.size
                                               + w2p.size + b2_2d.size) * w_itemsize
                            + M_pad * C_out_pad * o_itemsize),
        )
        out2d = pl.pallas_call(
            mlp_streamed_kernel,
            out_shape=jax.ShapeDtypeStruct((M_pad, C_out_pad), out_dtype),
            grid_spec=pltpu.PrefetchScalarGridSpec(
                num_scalar_prefetch=0,
                grid=grid,
                in_specs=[
                    pl.BlockSpec((tm, C_in), lambda i, h: (i, 0)),         # x rows
                    pl.BlockSpec((C_in, th), lambda i, h: (0, h)),         # W1 slice
                    pl.BlockSpec((1, th), lambda i, h: (0, h)),            # b1 slice
                    pl.BlockSpec((th, C_out_pad), lambda i, h: (h, 0)),    # W2 slice
                    pl.BlockSpec((1, C_out_pad), lambda i, h: (0, 0)),     # b2
                ],
                out_specs=pl.BlockSpec((tm, C_out_pad), lambda i, h: (i, 0)),
                scratch_shapes=[pltpu.VMEM((tm, C_out_pad), jnp.float32)],
            ),
            compiler_params=pltpu.CompilerParams(
                dimension_semantics=("parallel", "arbitrary")),
            cost_estimate=cost,
        )(x2d, w1p, b1_2d, w2p, b2_2d)

    if M_pad != M or C_out_pad != C_out:
        out2d = out2d[:M, :C_out]
    return out2d.reshape(B, N, C_out)


# ---------------------------------------------------------------------------
# Params / reference / tests
# ---------------------------------------------------------------------------
def init_mlp_params(key, in_features, hidden_features, out_features,
                    dtype=jnp.float32):
    """Deterministic init mimicking nn.Linear defaults (kaiming-uniform-ish)."""
    k1, k2, k3, k4 = jax.random.split(key, 4)
    bound1 = 1.0 / math.sqrt(in_features)
    bound2 = 1.0 / math.sqrt(hidden_features)
    # PyTorch stores weight as (out, in); we pre-transpose to (in, out).
    w1 = jax.random.uniform(k1, (in_features, hidden_features),
                            minval=-bound1, maxval=bound1, dtype=dtype)
    b1 = jax.random.uniform(k2, (hidden_features,),
                            minval=-bound1, maxval=bound1, dtype=dtype)
    w2 = jax.random.uniform(k3, (hidden_features, out_features),
                            minval=-bound2, maxval=bound2, dtype=dtype)
    b2 = jax.random.uniform(k4, (out_features,),
                            minval=-bound2, maxval=bound2, dtype=dtype)
    return w1, b1, w2, b2


def _reference(x, w1, b1, w2, b2):
    B, N, C_in = x.shape
    h = x.reshape(-1, C_in).astype(jnp.float32) @ w1.astype(jnp.float32) + b1
    h = 0.5 * h * (1.0 + jax.lax.erf(h / math.sqrt(2.0)))
    out = h @ w2.astype(jnp.float32) + b2
    return out.reshape(B, N, w2.shape[1])


if __name__ == "__main__":
    key = jax.random.PRNGKey(0)

    # Test 1: small ViT-MLP-like shapes (batch=2, tokens=8, in=32, hidden=64),
    # auto path -> weights-resident schedule.
    B, N, C_in = 2, 8, 32
    hidden = 64
    C_out = C_in  # out_features defaults to in_features
    kx, kp, key = jax.random.split(key, 3)
    x = jax.random.normal(kx, (B, N, C_in), dtype=jnp.float32)
    w1, b1, w2, b2 = init_mlp_params(kp, C_in, hidden, C_out)
    out = mlp_pallas(x, w1, b1, w2, b2)
    jax.block_until_ready(out)
    out_ref = _reference(x, w1, b1, w2, b2)
    assert jnp.allclose(out, out_ref, atol=1e-4, rtol=1e-4), "resident path mismatch"

    # Test 2: ragged token count + forced streamed path (exercises padding,
    # hidden-axis accumulation and the init/finalize pl.when phases).
    B2, N2, C2_in, H2, C2_out = 2, 13, 32, 256, 32
    kx2, kp2, key = jax.random.split(key, 3)
    x2 = jax.random.normal(kx2, (B2, N2, C2_in), dtype=jnp.float32)
    p2 = init_mlp_params(kp2, C2_in, H2, C2_out)
    out2 = mlp_pallas(x2, *p2, tm_max=8, th_max=128, force_path="streamed")
    jax.block_until_ready(out2)
    out2_ref = _reference(x2, *p2)
    assert jnp.allclose(out2, out2_ref, atol=1e-4, rtol=1e-4), "streamed path mismatch"

    # Test 3: bf16 MXU operands with f32 accumulation (perf path for v6e/v7x),
    # loose tolerance since operands are rounded to bf16.
    out3 = mlp_pallas(x, w1, b1, w2, b2, matmul_dtype=jnp.bfloat16)
    jax.block_until_ready(out3)
    assert jnp.allclose(out3, out_ref, atol=1e-1, rtol=1e-1), "bf16 path mismatch"

    # TODO(synk): the rest of VIT (patch-embed conv, attention, LayerNorm,
    # classifier head) is not fused here; this kernel covers the MLP block.
    print("KERNEL_OK")
</pallas_src>

<mosaic_0001>
module attributes {stable_mosaic.version = 11 : i64} {
  func.func @mlp_resident_kernel(%arg0: i32, %arg1: memref<16x32xf32, #tpu.memory_space<vmem>>, %arg2: memref<32x128xf32, #tpu.memory_space<vmem>>, %arg3: memref<1x128xf32, #tpu.memory_space<vmem>>, %arg4: memref<128x128xf32, #tpu.memory_space<vmem>>, %arg5: memref<1x128xf32, #tpu.memory_space<vmem>>, %arg6: memref<16x128xf32, #tpu.memory_space<vmem>>) attributes {dimension_semantics = [#tpu.dimension_semantics<parallel>], iteration_bounds = array<i64: 1>, scalar_prefetch = 0 : i64, scratch_operands = 0 : i64, tpu.core_type = #tpu.core_type<tc>, window_params = [{transform_indices = @transform_0, window_bounds = array<i64: 16, 32>}, {pipeline_mode = #tpu.pipeline_mode<synchronous>, transform_indices = @transform_1, window_bounds = array<i64: 32, 128>}, {pipeline_mode = #tpu.pipeline_mode<synchronous>, transform_indices = @transform_2, window_bounds = array<i64: 1, 128>}, {pipeline_mode = #tpu.pipeline_mode<synchronous>, transform_indices = @transform_3, window_bounds = array<i64: 128, 128>}, {pipeline_mode = #tpu.pipeline_mode<synchronous>, transform_indices = @transform_4, window_bounds = array<i64: 1, 128>}, {transform_indices = @transform_5, window_bounds = array<i64: 16, 128>}]} {
    %c0 = arith.constant 0 : index
    %c0_0 = arith.constant 0 : index
    %0 = vector.load %arg1[%c0, %c0_0] : memref<16x32xf32, #tpu.memory_space<vmem>>, vector<16x32xf32>
    %c0_1 = arith.constant 0 : index
    %c0_2 = arith.constant 0 : index
    %1 = vector.load %arg2[%c0_1, %c0_2] : memref<32x128xf32, #tpu.memory_space<vmem>>, vector<32x128xf32>
    %cst = arith.constant dense<0.000000e+00> : vector<16x128xf32>
    %2 = tpu.matmul %0, %1, %cst {dimension_numbers = #tpu.dot_dimension_numbers<[1], [0], [0], [1], [0, 0, 1, 1], [], []>} : vector<16x32xf32>, vector<32x128xf32>, vector<16x128xf32> -> vector<16x128xf32>
    %c0_3 = arith.constant 0 : index
    %c0_4 = arith.constant 0 : index
    %3 = vector.load %arg3[%c0_3, %c0_4] : memref<1x128xf32, #tpu.memory_space<vmem>>, vector<1x128xf32>
    %4 = vector.broadcast %3 : vector<1x128xf32> to vector<16x128xf32>
    %5 = arith.addf %2, %4 : vector<16x128xf32>
    %cst_5 = arith.constant 5.000000e-01 : f32
    %6 = vector.broadcast %cst_5 : f32 to vector<16x128xf32>
    %7 = arith.mulf %6, %5 : vector<16x128xf32>
    %cst_6 = arith.constant 0.707106769 : f32
    %8 = vector.broadcast %cst_6 : f32 to vector<16x128xf32>
    %9 = arith.mulf %5, %8 : vector<16x128xf32>
    %10 = math.erf %9 : vector<16x128xf32>
    %cst_7 = arith.constant 1.000000e+00 : f32
    %11 = vector.broadcast %cst_7 : f32 to vector<16x128xf32>
    %12 = arith.addf %11, %10 : vector<16x128xf32>
    %13 = arith.mulf %7, %12 : vector<16x128xf32>
    %c0_8 = arith.constant 0 : index
    %c0_9 = arith.constant 0 : index
    %14 = vector.load %arg4[%c0_8, %c0_9] : memref<128x128xf32, #tpu.memory_space<vmem>>, vector<128x128xf32>
    %cst_10 = arith.constant dense<0.000000e+00> : vector<16x128xf32>
    %15 = tpu.matmul %13, %14, %cst_10 {dimension_numbers = #tpu.dot_dimension_numbers<[1], [0], [0], [1], [0, 0, 1, 1], [], []>} : vector<16x128xf32>, vector<128x128xf32>, vector<16x128xf32> -> vector<16x128xf32>
    %c0_11 = arith.constant 0 : index
    %c0_12 = arith.constant 0 : index
    %16 = vector.load %arg5[%c0_11, %c0_12] : memref<1x128xf32, #tpu.memory_space<vmem>>, vector<1x128xf32>
    %17 = vector.broadcast %16 : vector<1x128xf32> to vector<16x128xf32>
    %18 = arith.addf %15, %17 : vector<16x128xf32>
    %c0_13 = arith.constant 0 : index
    %c0_14 = arith.constant 0 : index
    %19 = vector.load %arg6[%c0_13, %c0_14] : memref<16x128xf32, #tpu.memory_space<vmem>>, vector<16x128xf32>
    tpu.vector_store %arg6[%c0_13, %c0_14], %18 {strides = array<i32>} : memref<16x128xf32, #tpu.memory_space<vmem>>, vector<16x128xf32>,
    return
  }
  func.func @transform_0(%arg0: i32) -> (i32, i32) {
    %c0_i32 = arith.constant 0 : i32
    %c0_i32_0 = arith.constant 0 : i32
    return %arg0, %c0_i32 : i32, i32
  }
  func.func @transform_1(%arg0: i32) -> (i32, i32) {
    %c0_i32 = arith.constant 0 : i32
    %c0_i32_0 = arith.constant 0 : i32
    %c0_i32_1 = arith.constant 0 : i32
    return %c0_i32, %c0_i32_0 : i32, i32
  }
  func.func @transform_2(%arg0: i32) -> (i32, i32) {
    %c0_i32 = arith.constant 0 : i32
    %c0_i32_0 = arith.constant 0 : i32
    %c0_i32_1 = arith.constant 0 : i32
    return %c0_i32, %c0_i32_0 : i32, i32
  }
  func.func @transform_3(%arg0: i32) -> (i32, i32) {
    %c0_i32 = arith.constant 0 : i32
    %c0_i32_0 = arith.constant 0 : i32
    %c0_i32_1 = arith.constant 0 : i32
    return %c0_i32, %c0_i32_0 : i32, i32
  }
  func.func @transform_4(%arg0: i32) -> (i32, i32) {
    %c0_i32 = arith.constant 0 : i32
    %c0_i32_0 = arith.constant 0 : i32
    %c0_i32_1 = arith.constant 0 : i32
    return %c0_i32, %c0_i32_0 : i32, i32
  }
  func.func @transform_5(%arg0: i32) -> (i32, i32) {
    %c0_i32 = arith.constant 0 : i32
    %c0_i32_0 = arith.constant 0 : i32
    return %arg0, %c0_i32 : i32, i32
  }
}

</mosaic_0001>

<llo_original>
// kernel: tpu_custom_call.1
$region0: #{tpu_custom_call.1}
  #allocation0 [shape = 'u32[]', space=smem, size = 0x4, offset = 0x4, fixed_abs, tag = 'smem constant byte address 0x4 - core index']
  #allocation1 [shape = 'u32[144,128]{1,0:T(1,128)}', space=vmem, size = 0x12000, scoped, tag = 'internal scratch']
  %s0 = inlined_call_operand.hbm [shape: f32[16,32], index: 0, kind: input, shape index: {}]
  %s1 = inlined_call_operand.hbm [shape: f32[32,128], index: 1, kind: input, shape index: {}]
  %s2 = inlined_call_operand.vmem [shape: f32[1,128], index: 2, kind: input, shape index: {}]
  %s3 = inlined_call_operand.hbm [shape: f32[128,128], index: 3, kind: input, shape index: {}]
  %s4 = inlined_call_operand.vmem [shape: f32[1,128], index: 4, kind: input, shape index: {}]
  %s5 = inlined_call_operand.hbm [shape: f32[16,128], index: 5, kind: output, shape index: {}]
  %s6 = sld [smem:[#allocation0]]
  $region42: #{tpu_custom_call.1} parent=0
    _
  %s8 = ssub.s32 1, %s6
  %s9 = scalar_select 0, %s8, %s6
  $region1: #{tpu_custom_call.1} parent=0
    #allocation2 [shape = 'u8[8192]{0}', space=vmem, size = 0x2000, scoped, tag = 'input window, operand 0, single buffered']
    #allocation3 [shape = 's32[1]{0}', space=sflag, size = 0x4, scoped, tag = 'scoped memory for tpu_custom_call.1']
    #allocation4 [shape = 's32[1]{0}', space=sflag, size = 0x4, scoped, tag = 'scoped memory for tpu_custom_call.1']
    #allocation5 [shape = 'u8[16384]{0}', space=vmem, size = 0x4000, scoped, tag = 'input window, operand 1, single buffered']
    #allocation6 [shape = 's32[1]{0}', space=sflag, size = 0x4, scoped, tag = 'scoped memory for tpu_custom_call.1']
    #allocation7 [shape = 'u8[65536]{0}', space=vmem, size = 0x10000, scoped, tag = 'input window, operand 3, single buffered']
    #allocation8 [shape = 'u8[8192]{0}', space=vmem, size = 0x2000, scoped, tag = 'output window, operand 0, single buffered']
    %10 = vsyncpa [#allocation3], 0
    %11 = vsyncpa [#allocation6], 0
    %12 = vsyncpa [#allocation4], 0
    // Predicated region
    $region2: #{tpu_custom_call.1} parent=1 // pred_check
      _
    $region3: #{tpu_custom_call.1} parent=1 // pred_check_branch
      %14 = sbr.rel (0) target = $region5
    $region4: #{tpu_custom_call.1} parent=1 // pred_region
      %s16 = ssub.s32 256, 256
      %17 = vsyncadd [#allocation3], %s16
      %s18 = sshll.u32 [#allocation2], 4
      %s19 = int_to_ptr.vmem [resolvable:$true] %s18
      %24 = dma.hbm_to_vmem [thread:$0]  %s0, 256, %s19, [#allocation3], 128, 128, 8
    $region5: #{tpu_custom_call.1} parent=1 // pred_fallthru
      _
    // Predicated region
    $region6: #{tpu_custom_call.1} parent=1 // pred_check
      _
    $region7: #{tpu_custom_call.1} parent=1 // pred_check_branch
      %26 = sbr.rel (0) target = $region9
    $region8: #{tpu_custom_call.1} parent=1 // pred_region
      %s28 = ssub.s32 512, 512
      %29 = vsyncadd [#allocation6], %s28
      %s30 = sshll.u32 [#allocation5], 4
      %s31 = int_to_ptr.vmem [resolvable:$true] %s30
      %36 = dma.hbm_to_vmem [thread:$0]  %s1, 512, %s31, [#allocation6], 128, 128, 8
    $region9: #{tpu_custom_call.1} parent=1 // pred_fallthru
      _
    // Predicated region
    $region10: #{tpu_custom_call.1} parent=1 // pred_check
      _
    $region11: #{tpu_custom_call.1} parent=1 // pred_check_branch
      %38 = sbr.rel (0) target = $region13
    $region12: #{tpu_custom_call.1} parent=1 // pred_region
      _
    $region13: #{tpu_custom_call.1} parent=1 // pred_fallthru
      _
    // Predicated region
    $region14: #{tpu_custom_call.1} parent=1 // pred_check
      _
    $region15: #{tpu_custom_call.1} parent=1 // pred_check_branch
      %40 = sbr.rel (0) target = $region17
    $region16: #{tpu_custom_call.1} parent=1 // pred_region
      %s42 = ssub.s32 2048, 2048
      %43 = vsyncadd [#allocation6], %s42
      %s44 = sshll.u32 [#allocation7], 4
      %s45 = int_to_ptr.vmem [resolvable:$true] %s44
      %50 = dma.hbm_to_vmem [thread:$0]  %s3, 2048, %s45, [#allocation6], 128, 128, 8
    $region17: #{tpu_custom_call.1} parent=1 // pred_fallthru
      _
    // Predicated region
    $region18: #{tpu_custom_call.1} parent=1 // pred_check
      _
    $region19: #{tpu_custom_call.1} parent=1 // pred_check_branch
      %52 = sbr.rel (0) target = $region21
    $region20: #{tpu_custom_call.1} parent=1 // pred_region
      _
    $region21: #{tpu_custom_call.1} parent=1 // pred_fallthru
      _
    // Predicated region
    $region22: #{tpu_custom_call.1} parent=1 // pred_check
      _
    $region23: #{tpu_custom_call.1} parent=1 // pred_check_branch
      %54 = sbr.rel (0) target = $region25
    $region24: #{tpu_custom_call.1} parent=1 // pred_region
      %55 = dma.done [#allocation3], 256
    $region25: #{tpu_custom_call.1} parent=1 // pred_fallthru
      _
    // Predicated region
    $region26: #{tpu_custom_call.1} parent=1 // pred_check
      _
    $region27: #{tpu_custom_call.1} parent=1 // pred_check_branch
      %57 = sbr.rel (0) target = $region29
    $region28: #{tpu_custom_call.1} parent=1 // pred_region
      %58 = dma.done [#allocation6], 512
    $region29: #{tpu_custom_call.1} parent=1 // pred_fallthru
      _
    // Predicated region
    $region30: #{tpu_custom_call.1} parent=1 // pred_check
      _
    $region31: #{tpu_custom_call.1} parent=1 // pred_check_branch
      %60 = sbr.rel (0) target = $region33
    $region32: #{tpu_custom_call.1} parent=1 // pred_region
      %61 = dma.done [#allocation6], 2048
    $region33: #{tpu_custom_call.1} parent=1 // pred_fallthru
      _
    %v62 = vld [vmem:[#allocation2] sm:$0xff]
    %v63 = vld [vmem:[#allocation2 + $0x8] sm:$0xff]
    %v64 = vld [vmem:[#allocation5] sm:$0xff]
    %v65 = vld [vmem:[#allocation5 + $0x8] sm:$0xff]
    %v66 = vld [vmem:[#allocation5 + $0x10] sm:$0xff]
    %v67 = vld [vmem:[#allocation5 + $0x18] sm:$0xff]
    %v68 = vld [vmem:[%s2] sm:$0x1]
    %v70 = vlaneseq
    %v71 = vshrl.u32 %v70, 7
    %v72 = vsub.s32 0, %v71
    %v73 = vrot.slane %v68, %v72
    %vm75 = vcmask 261120
    %v77 = vsel %vm75, %v62, 0
    %v80 = vsel %vm75, %v63, 0
    %82 = vmatprep.subr.mxu0 0.0
    %83 = vmatpush1.msra.mxu0 0.0
    %84 = vmatprep.subr.mxu0 0.0
    %85 = vmatpush1.msra.mxu0 0.0
    %86 = vmatprep.subr.mxu0 0.0
    %87 = vmatpush1.msra.mxu0 0.0
    %88 = vmatprep.subr.mxu0 0.0
    %89 = vmatpush1.msra.mxu0 0.0
    %90 = vmatprep.subr.mxu0 0.0
    %91 = vmatpush1.msra.mxu0 0.0
    %92 = vmatprep.subr.mxu0 0.0
    %93 = vmatpush1.msra.mxu0 0.0
    %94 = vmatprep.subr.mxu0 0.0
    %95 = vmatpush1.msra.mxu0 0.0
    %96 = vmatprep.subr.mxu0 0.0
    %97 = vmatpush1.msra.mxu0 0.0
    %98 = vmatprep.subr.mxu0 0.0
    %99 = vmatpush1.msra.mxu0 0.0
    %100 = vmatprep.subr.mxu0 0.0
    %101 = vmatpush1.msra.mxu0 0.0
    %102 = vmatprep.subr.mxu0 0.0
    %103 = vmatpush1.msra.mxu0 0.0
    %104 = vmatprep.subr.mxu0 0.0
    %105 = vmatpush1.msra.mxu0 0.0
    %106 = vmatprep.subr.mxu0 0.0
    %107 = vmatpush1.msra.mxu0 %v67
    %108 = vmatprep.subr.mxu0 0.0
    %109 = vmatpush1.msra.mxu0 %v66
    %110 = vmatprep.subr.mxu0 0.0
    %111 = vmatpush1.msra.mxu0 %v65
    %112 = vmatprep.subr.mxu0 0.0
    %113 = vmatpush1.msra.mxu0 %v64
    %114 = vmatprep.subr.mxu0 0.0
    %115 = vmatpush2.msra.mxu0 0.0
    %116 = vmatprep.subr.mxu0 0.0
    %117 = vmatpush2.msra.mxu0 0.0
    %118 = vmatprep.subr.mxu0 0.0
    %119 = vmatpush2.msra.mxu0 0.0
    %120 = vmatprep.subr.mxu0 0.0
    %121 = vmatpush2.msra.mxu0 0.0
    %122 = vmatprep.subr.mxu0 0.0
    %123 = vmatpush2.msra.mxu0 0.0
    %124 = vmatprep.subr.mxu0 0.0
    %125 = vmatpush2.msra.mxu0 0.0
    %126 = vmatprep.subr.mxu0 0.0
    %127 = vmatpush2.msra.mxu0 0.0
    %128 = vmatprep.subr.mxu0 0.0
    %129 = vmatpush2.msra.mxu0 0.0
    %130 = vmatprep.subr.mxu0 0.0
    %131 = vmatpush2.msra.mxu0 0.0
    %132 = vmatprep.subr.mxu0 0.0
    %133 = vmatpush2.msra.mxu0 0.0
    %134 = vmatprep.subr.mxu0 0.0
    %135 = vmatpush2.msra.mxu0 0.0
    %136 = vmatprep.subr.mxu0 0.0
    %137 = vmatpush2.msra.mxu0 0.0
    %138 = vmatprep.subr.mxu0 0.0
    %139 = vmatpush2.msra.mxu0 0.0
    %140 = vmatprep.subr.mxu0 0.0
    %141 = vmatpush2.msra.mxu0 0.0
    %142 = vmatprep.subr.mxu0 0.0
    %143 = vmatpush2.msra.mxu0 0.0
    %144 = vmatprep.subr.mxu0 0.0
    %145 = vmatpush2.msra.mxu0 0.0
    %146 = vmatprep.mubr.f32.mxu0 0.0
    %147 = vmatmul.mubr.f32.gmra.mxu0 %v77
    %v148 = vpop.f32.mrf.mxu0
    %v149 = vadd.f32 %v73, %v148
    %v150 = vpop.f32.mrf.mxu0
    %151 = vmatprep.mubr.f32.mxu0 0.0
    %152 = vmatmul.mubr.f32.gmra.mxu0 %v80
    %v153 = vpop.f32.mrf.mxu0
    %v154 = vadd.f32 %v73, %v153
    %v155 = vpop.f32.mrf.mxu0
    %156 = vdwg.mxu0
    %v157 = vmul.f32 %v149, 0.5
    %v158 = vmul.f32 %v154, 0.5
    %v159 = vmul.f32 %v149, 0.70710677
    %v160 = vmul.f32 %v154, 0.70710677
    %v161 = verf.f32.pop %v159
    %v162 = verf.f32.pop %v160
    %v163 = vadd.f32 %v161, 1.0
    %v164 = vadd.f32 %v162, 1.0
    %v165 = vmul.f32 %v157, %v163
    %v166 = vmul.f32 %v158, %v164
    %v167 = vld [vmem:[#allocation7] sm:$0xff]
    %v168 = vld [vmem:[#allocation7 + $0x8] sm:$0xff]
    %v169 = vld [vmem:[#allocation7 + $0x10] sm:$0xff]
    %v170 = vld [vmem:[#allocation7 + $0x18] sm:$0xff]
    %v171 = vld [vmem:[#allocation7 + $0x20] sm:$0xff]
    %v172 = vld [vmem:[#allocation7 + $0x28] sm:$0xff]
    %v173 = vld [vmem:[#allocation7 + $0x30] sm:$0xff]
    %v174 = vld [vmem:[#allocation7 + $0x38] sm:$0xff]
    %v175 = vld [vmem:[#allocation7 + $0x40] sm:$0xff]
    %v176 = vld [vmem:[#allocation7 + $0x48] sm:$0xff]
    %v177 = vld [vmem:[#allocation7 + $0x50] sm:$0xff]
    %v178 = vld [vmem:[#allocation7 + $0x58] sm:$0xff]
    %v179 = vld [vmem:[#allocation7 + $0x60] sm:$0xff]
    %v180 = vld [vmem:[#allocation7 + $0x68] sm:$0xff]
    %v181 = vld [vmem:[#allocation7 + $0x70] sm:$0xff]
    %v182 = vld [vmem:[#allocation7 + $0x78] sm:$0xff]
    %v183 = vld [vmem:[%s4] sm:$0x1]
    %v185 = vlaneseq
    %v186 = vshrl.u32 %v185, 7
    %v187 = vsub.s32 0, %v186
    %v188 = vrot.slane %v183, %v187
    %190 = vmatprep.subr.mxu0 0.0
    %191 = vmatpush1.msra.mxu0 %v182
    %192 = vmatprep.subr.mxu0 0.0
    %193 = vmatpush1.msra.mxu0 %v181
    %194 = vmatprep.subr.mxu0 0.0
    %195 = vmatpush1.msra.mxu0 %v180
    %196 = vmatprep.subr.mxu0 0.0
    %197 = vmatpush1.msra.mxu0 %v179
    %198 = vmatprep.subr.mxu0 0.0
    %199 = vmatpush1.msra.mxu0 %v178
    %200 = vmatprep.subr.mxu0 0.0
    %201 = vmatpush1.msra.mxu0 %v177
    %202 = vmatprep.subr.mxu0 0.0
    %203 = vmatpush1.msra.mxu0 %v176
    %204 = vmatprep.subr.mxu0 0.0
    %205 = vmatpush1.msra.mxu0 %v175
    %206 = vmatprep.subr.mxu0 0.0
    %207 = vmatpush1.msra.mxu0 %v174
    %208 = vmatprep.subr.mxu0 0.0
    %209 = vmatpush1.msra.mxu0 %v173
    %210 = vmatprep.subr.mxu0 0.0
    %211 = vmatpush1.msra.mxu0 %v172
    %212 = vmatprep.subr.mxu0 0.0
    %213 = vmatpush1.msra.mxu0 %v171
    %214 = vmatprep.subr.mxu0 0.0
    %215 = vmatpush1.msra.mxu0 %v170
    %216 = vmatprep.subr.mxu0 0.0
    %217 = vmatpush1.msra.mxu0 %v169
    %218 = vmatprep.subr.mxu0 0.0
    %219 = vmatpush1.msra.mxu0 %v168
    %220 = vmatprep.subr.mxu0 0.0
    %221 = vmatpush1.msra.mxu0 %v167
    %222 = vmatprep.subr.mxu0 0.0
    %223 = vmatpush2.msra.mxu0 0.0
    %224 = vmatprep.subr.mxu0 0.0
    %225 = vmatpush2.msra.mxu0 0.0
    %226 = vmatprep.subr.mxu0 0.0
    %227 = vmatpush2.msra.mxu0 0.0
    %228 = vmatprep.subr.mxu0 0.0
    %229 = vmatpush2.msra.mxu0 0.0
    %230 = vmatprep.subr.mxu0 0.0
    %231 = vmatpush2.msra.mxu0 0.0
    %232 = vmatprep.subr.mxu0 0.0
    %233 = vmatpush2.msra.mxu0 0.0
    %234 = vmatprep.subr.mxu0 0.0
    %235 = vmatpush2.msra.mxu0 0.0
    %236 = vmatprep.subr.mxu0 0.0
    %237 = vmatpush2.msra.mxu0 0.0
    %238 = vmatprep.subr.mxu0 0.0
    %239 = vmatpush2.msra.mxu0 0.0
    %240 = vmatprep.subr.mxu0 0.0
    %241 = vmatpush2.msra.mxu0 0.0
    %242 = vmatprep.subr.mxu0 0.0
    %243 = vmatpush2.msra.mxu0 0.0
    %244 = vmatprep.subr.mxu0 0.0
    %245 = vmatpush2.msra.mxu0 0.0
    %246 = vmatprep.subr.mxu0 0.0
    %247 = vmatpush2.msra.mxu0 0.0
    %248 = vmatprep.subr.mxu0 0.0
    %249 = vmatpush2.msra.mxu0 0.0
    %250 = vmatprep.subr.mxu0 0.0
    %251 = vmatpush2.msra.mxu0 0.0
    %252 = vmatprep.subr.mxu0 0.0
    %253 = vmatpush2.msra.mxu0 0.0
    %254 = vmatprep.mubr.f32.mxu0 0.0
    %255 = vmatmul.mubr.f32.gmra.mxu0 %v165
    %v256 = vpop.f32.mrf.mxu0
    %v257 = vadd.f32 %v188, %v256
    %v258 = vpop.f32.mrf.mxu0
    %259 = vmatprep.mubr.f32.mxu0 0.0
    %260 = vmatmul.mubr.f32.gmra.mxu0 %v166
    %v261 = vpop.f32.mrf.mxu0
    %v262 = vadd.f32 %v188, %v261
    %v263 = vpop.f32.mrf.mxu0
    %264 = vdwg.mxu0
    %265 = vst [vmem:[#allocation8] sm:$0xff] %v257
    %266 = vst [vmem:[#allocation8 + $0x8] sm:$0xff] %v262
    // Predicated region
    $region34: #{tpu_custom_call.1} parent=1 // pred_check
      _
    $region35: #{tpu_custom_call.1} parent=1 // pred_check_branch
      %268 = sbr.rel (0) target = $region37
    $region36: #{tpu_custom_call.1} parent=1 // pred_region
      %s270 = ssub.s32 256, 256
      %271 = vsyncadd [#allocation4], %s270
      %s272 = sshll.u32 [#allocation8], 4
      %s273 = int_to_ptr.vmem [resolvable:$true] %s272
      %278 = dma.vmem_to_hbm [thread:$0]  %s273, 256, %s5, [#allocation4], 128, 128, 8
    $region37: #{tpu_custom_call.1} parent=1 // pred_fallthru
      _
    // Predicated region
    $region38: #{tpu_custom_call.1} parent=1 // pred_check
      _
    $region39: #{tpu_custom_call.1} parent=1 // pred_check_branch
      %280 = sbr.rel (0) target = $region41
    $region40: #{tpu_custom_call.1} parent=1 // pred_region
      %281 = dma.done [#allocation4], 256
    $region41: #{tpu_custom_call.1} parent=1 // pred_fallthru
      _
    %282 = vsyncpa [#allocation3], 1
    %283 = vsyncpa [#allocation6], 1
    %284 = vsyncpa [#allocation4], 1

</llo_original>
